<compile_context>
chip_gen: v5e
topology: v5e:2x2
jax: 0.10.0
libtpu: 0.0.40
codegen_flags: <defaults>
</compile_context>

<pallas_src>
import jax
import jax.numpy as jnp
from jax.experimental import pallas as pl
from jax.experimental.pallas import tpu as pltpu


def _make_kernel(bt, c, cr, thw, lane, chunks):
    """Kernel factory closing over static tile geometry."""

    def kernel(x_ref, w1t_ref, w2t_ref, o_ref, acc_ref):
        k = pl.program_id(1)

        @pl.when(k == 0)
        def _():
            acc_ref[...] = jnp.full_like(acc_ref, -jnp.inf)

        xt = x_ref[...].astype(jnp.float32)              # (bt, c, thw)

        # Lane-wide running max: elementwise (VPU) maxes over 128-lane slices,
        # no per-tile cross-lane reduce.
        if chunks == 1:
            part = xt
        elif chunks <= 32:
            part = xt[:, :, 0:lane]
            for j in range(1, chunks):
                part = jnp.maximum(part, xt[:, :, j * lane:(j + 1) * lane])
        else:
            part = jnp.max(xt.reshape(bt, c, chunks, lane), axis=2)
        acc_ref[...] = jnp.maximum(acc_ref[...], part)   # (bt, c, lane)

        @pl.when(k == pl.num_programs(1) - 1)
        def _():
            # Single cross-lane reduce -> AdaptiveMaxPool2d(1) result.
            pooled = jnp.max(acc_ref[...], axis=-1)                     # (bt, c)
            y1 = jnp.dot(pooled, w1t_ref[...],
                         preferred_element_type=jnp.float32)            # (bt, cr)
            y1 = jnp.maximum(y1, 0.0)                                   # ReLU
            y2 = jnp.dot(y1, w2t_ref[...],
                         preferred_element_type=jnp.float32)            # (bt, c)
            sig = jax.nn.sigmoid(y2)                                    # exact sigmoid
            o_ref[...] = sig[:, None, :].astype(o_ref.dtype)            # (bt, 1, c)

    return kernel


def channel_attention(x, fc1_w, fc2_w, *, target_block_bytes=1 << 20):
    """x: (B, C, H, W); fc1_w: (C//r, C, 1, 1); fc2_w: (C, C//r, 1, 1)."""
    B, C, H, W = x.shape
    HW = H * W
    Cr = fc1_w.shape[0]
    itemsize = jnp.dtype(x.dtype).itemsize

    x3 = x.reshape(B, C, HW)                       # contiguous view, no data movement
    w1t = fc1_w.reshape(Cr, C).T.astype(jnp.float32)   # (C, Cr)   fc1 weight, pre-transposed
    w2t = fc2_w.reshape(C, Cr).T.astype(jnp.float32)   # (Cr, C)   fc2 weight, pre-transposed

    # ---- HW tiling: keep the input block bounded regardless of H*W ----------
    per_batch_bytes = C * HW * itemsize
    if per_batch_bytes <= target_block_bytes or HW % 128 != 0:
        # TODO(synk): for huge H*W not divisible by 128 this falls back to one
        # monolithic HW block (correct, just not VMEM-bounded).
        thw = HW
    else:
        thw = 128
        d = 128
        while d <= HW:
            if HW % d == 0 and C * d * itemsize <= target_block_bytes:
                thw = d
            d += 128
    n_hw = HW // thw

    # ---- batch grouping: amortize per-step overhead on small feature maps ---
    block_bytes = C * thw * itemsize
    bt_cap = max(1, target_block_bytes // max(block_bytes, 1))
    if B >= 2:
        bt_cap = min(bt_cap, max(1, B // 2))  # >=2 parallel steps for v7x megacore
    bt = 1
    for d in range(1, B + 1):
        if B % d == 0 and d <= bt_cap:
            bt = d
    n_b = B // bt

    lane = 128 if thw % 128 == 0 else thw
    chunks = thw // lane

    kernel = _make_kernel(bt, C, Cr, thw, lane, chunks)

    cost = pl.CostEstimate(
        flops=2 * B * (C * Cr + Cr * C),
        transcendentals=B * C,
        bytes_accessed=B * C * HW * itemsize + (w1t.size + w2t.size) * 4
                       + B * C * itemsize,
    )

    out = pl.pallas_call(
        kernel,
        out_shape=jax.ShapeDtypeStruct((B, 1, C), x.dtype),
        grid=(n_b, n_hw),
        in_specs=[
            pl.BlockSpec((bt, C, thw), lambda b, k: (b, 0, k)),
            pl.BlockSpec((C, Cr), lambda b, k: (0, 0)),
            pl.BlockSpec((Cr, C), lambda b, k: (0, 0)),
        ],
        out_specs=pl.BlockSpec((bt, 1, C), lambda b, k: (b, 0, 0)),
        scratch_shapes=[pltpu.VMEM((bt, C, lane), jnp.float32)],
        compiler_params=pltpu.CompilerParams(
            dimension_semantics=("parallel", "arbitrary"),
            vmem_limit_bytes=32 * 1024 * 1024),
        cost_estimate=cost,
    )(x3, w1t, w2t)

    return out.reshape(B, C, 1, 1)


# ---------------------------------------------------------------------------
# Pure-JAX reference (mirrors the PyTorch forward exactly)
# ---------------------------------------------------------------------------
def reference(x, fc1_w, fc2_w):
    B, C, H, W = x.shape
    Cr = fc1_w.shape[0]
    pooled = jnp.max(x.reshape(B, C, H * W).astype(jnp.float32), axis=-1)  # (B, C)
    y1 = jnp.maximum(pooled @ fc1_w.reshape(Cr, C).T, 0.0)                 # (B, C//r)
    y2 = y1 @ fc2_w.reshape(C, Cr).T                                       # (B, C)
    return jax.nn.sigmoid(y2).reshape(B, C, 1, 1)


if __name__ == "__main__":
    B, C, H, W = 2, 64, 16, 16     # in_planes = 64, ratio = 4 (module defaults)
    ratio = 4
    Cr = C // ratio

    key = jax.random.PRNGKey(0)
    k1, k2, k3 = jax.random.split(key, 3)
    x = jax.random.normal(k1, (B, C, H, W), jnp.float32)
    fc1_w = jax.random.normal(k2, (Cr, C, 1, 1), jnp.float32) / jnp.sqrt(C)
    fc2_w = jax.random.normal(k3, (C, Cr, 1, 1), jnp.float32) / jnp.sqrt(Cr)

    out = jax.block_until_ready(channel_attention(x, fc1_w, fc2_w))
    ref = reference(x, fc1_w, fc2_w)

    err = float(jnp.max(jnp.abs(out.astype(jnp.float32) - ref)))
    assert out.shape == (B, C, 1, 1), out.shape
    assert err < 1e-5, f"max abs error too large: {err}"
    print("KERNEL_OK")
</pallas_src>

<mosaic_0001>
module attributes {stable_mosaic.version = 11 : i64} {
  func.func @kernel(%arg0: i32, %arg1: i32, %arg2: memref<1x64x256xf32, #tpu.memory_space<vmem>>, %arg3: memref<64x16xf32, #tpu.memory_space<vmem>>, %arg4: memref<16x64xf32, #tpu.memory_space<vmem>>, %arg5: memref<1x1x64xf32, #tpu.memory_space<vmem>>, %arg6: memref<1x64x128xf32, #tpu.memory_space<vmem>>) attributes {dimension_semantics = [#tpu.dimension_semantics<parallel>, #tpu.dimension_semantics<arbitrary>], iteration_bounds = array<i64: 2, 1>, scalar_prefetch = 0 : i64, scratch_operands = 1 : i64, tpu.core_type = #tpu.core_type<tc>, window_params = [{transform_indices = @transform_0, window_bounds = array<i64: 1, 64, 256>}, {pipeline_mode = #tpu.pipeline_mode<synchronous>, transform_indices = @transform_1, window_bounds = array<i64: 64, 16>}, {pipeline_mode = #tpu.pipeline_mode<synchronous>, transform_indices = @transform_2, window_bounds = array<i64: 16, 64>}, {transform_indices = @transform_3, window_bounds = array<i64: 1, 1, 64>}]} {
    %c0_i32 = arith.constant 0 : i32
    %0 = arith.cmpi eq, %arg1, %c0_i32 : i32
    %1 = arith.extui %0 : i1 to i32
    %c0_i32_0 = arith.constant 0 : i32
    %2 = arith.cmpi ne, %1, %c0_i32_0 : i32
    scf.if %2 {
      %cst = arith.constant 0xFF800000 : f32
      %13 = vector.broadcast %cst : f32 to vector<1x64x128xf32>
      %c0_11 = arith.constant 0 : index
      %c0_12 = arith.constant 0 : index
      %c0_13 = arith.constant 0 : index
      %14 = vector.load %arg6[%c0_11, %c0_12, %c0_13] : memref<1x64x128xf32, #tpu.memory_space<vmem>>, vector<1x64x128xf32>
      tpu.vector_store %arg6[%c0_11, %c0_12, %c0_13], %13 {strides = array<i32>} : memref<1x64x128xf32, #tpu.memory_space<vmem>>, vector<1x64x128xf32>,
    } else {
    }
    %c0 = arith.constant 0 : index
    %c0_1 = arith.constant 0 : index
    %c0_2 = arith.constant 0 : index
    %3 = vector.load %arg2[%c0, %c0_1, %c0_2] : memref<1x64x256xf32, #tpu.memory_space<vmem>>, vector<1x64x256xf32>
    %4 = vector.extract_strided_slice %3 {offsets = [0, 0, 0], sizes = [1, 64, 128], strides = [1, 1, 1]} : vector<1x64x256xf32> to vector<1x64x128xf32>
    %5 = vector.extract_strided_slice %3 {offsets = [0, 0, 128], sizes = [1, 64, 128], strides = [1, 1, 1]} : vector<1x64x256xf32> to vector<1x64x128xf32>
    %6 = arith.maximumf %4, %5 : vector<1x64x128xf32>
    %c0_3 = arith.constant 0 : index
    %c0_4 = arith.constant 0 : index
    %c0_5 = arith.constant 0 : index
    %7 = vector.load %arg6[%c0_3, %c0_4, %c0_5] : memref<1x64x128xf32, #tpu.memory_space<vmem>>, vector<1x64x128xf32>
    %8 = arith.maximumf %7, %6 : vector<1x64x128xf32>
    %c0_6 = arith.constant 0 : index
    %c0_7 = arith.constant 0 : index
    %c0_8 = arith.constant 0 : index
    %9 = vector.load %arg6[%c0_6, %c0_7, %c0_8] : memref<1x64x128xf32, #tpu.memory_space<vmem>>, vector<1x64x128xf32>
    tpu.vector_store %arg6[%c0_6, %c0_7, %c0_8], %8 {strides = array<i32>} : memref<1x64x128xf32, #tpu.memory_space<vmem>>, vector<1x64x128xf32>,
    %c0_i32_9 = arith.constant 0 : i32
    %10 = arith.cmpi eq, %arg1, %c0_i32_9 : i32
    %11 = arith.extui %10 : i1 to i32
    %c0_i32_10 = arith.constant 0 : i32
    %12 = arith.cmpi ne, %11, %c0_i32_10 : i32
    scf.if %12 {
      %c0_11 = arith.constant 0 : index
      %c0_12 = arith.constant 0 : index
      %c0_13 = arith.constant 0 : index
      %13 = vector.load %arg6[%c0_11, %c0_12, %c0_13] : memref<1x64x128xf32, #tpu.memory_space<vmem>>, vector<1x64x128xf32>
      %cst = arith.constant dense<0xFF800000> : vector<1x64xf32>
      %14 = vector.multi_reduction <maximumf>, %13, %cst [2] : vector<1x64x128xf32> to vector<1x64xf32>
      %c0_14 = arith.constant 0 : index
      %c0_15 = arith.constant 0 : index
      %15 = vector.load %arg3[%c0_14, %c0_15] : memref<64x16xf32, #tpu.memory_space<vmem>>, vector<64x16xf32>
      %cst_16 = arith.constant dense<0.000000e+00> : vector<1x16xf32>
      %16 = tpu.matmul %14, %15, %cst_16 {dimension_numbers = #tpu.dot_dimension_numbers<[1], [0], [0], [1], [0, 0, 1, 1], [], []>} : vector<1x64xf32>, vector<64x16xf32>, vector<1x16xf32> -> vector<1x16xf32>
      %cst_17 = arith.constant 0.000000e+00 : f32
      %17 = vector.broadcast %cst_17 : f32 to vector<1x16xf32>
      %18 = arith.maximumf %16, %17 : vector<1x16xf32>
      %c0_18 = arith.constant 0 : index
      %c0_19 = arith.constant 0 : index
      %19 = vector.load %arg4[%c0_18, %c0_19] : memref<16x64xf32, #tpu.memory_space<vmem>>, vector<16x64xf32>
      %cst_20 = arith.constant dense<0.000000e+00> : vector<1x64xf32>
      %20 = tpu.matmul %18, %19, %cst_20 {dimension_numbers = #tpu.dot_dimension_numbers<[1], [0], [0], [1], [0, 0, 1, 1], [], []>} : vector<1x16xf32>, vector<16x64xf32>, vector<1x64xf32> -> vector<1x64xf32>
      %21 = arith.negf %20 : vector<1x64xf32>
      %22 = math.exp %21 : vector<1x64xf32>
      %cst_21 = arith.constant 1.000000e+00 : f32
      %23 = vector.broadcast %cst_21 : f32 to vector<1x64xf32>
      %24 = arith.addf %23, %22 : vector<1x64xf32>
      %25 = arith.divf %23, %24 : vector<1x64xf32>
      %26 = vector.shape_cast %25 : vector<1x64xf32> to vector<1x1x64xf32>
      %c0_22 = arith.constant 0 : index
      %c0_23 = arith.constant 0 : index
      %c0_24 = arith.constant 0 : index
      %27 = vector.load %arg5[%c0_22, %c0_23, %c0_24] : memref<1x1x64xf32, #tpu.memory_space<vmem>>, vector<1x1x64xf32>
      tpu.vector_store %arg5[%c0_22, %c0_23, %c0_24], %26 {strides = array<i32>} : memref<1x1x64xf32, #tpu.memory_space<vmem>>, vector<1x1x64xf32>,
    } else {
    }
    return
  }
  func.func @transform_0(%arg0: i32, %arg1: i32) -> (i32, i32, i32) {
    %c0_i32 = arith.constant 0 : i32
    %c0_i32_0 = arith.constant 0 : i32
    return %arg0, %c0_i32, %arg1 : i32, i32, i32
  }
  func.func @transform_1(%arg0: i32, %arg1: i32) -> (i32, i32) {
    %c0_i32 = arith.constant 0 : i32
    %c0_i32_0 = arith.constant 0 : i32
    %c0_i32_1 = arith.constant 0 : i32
    return %c0_i32, %c0_i32_0 : i32, i32
  }
  func.func @transform_2(%arg0: i32, %arg1: i32) -> (i32, i32) {
    %c0_i32 = arith.constant 0 : i32
    %c0_i32_0 = arith.constant 0 : i32
    %c0_i32_1 = arith.constant 0 : i32
    return %c0_i32, %c0_i32_0 : i32, i32
  }
  func.func @transform_3(%arg0: i32, %arg1: i32) -> (i32, i32, i32) {
    %c0_i32 = arith.constant 0 : i32
    %c0_i32_0 = arith.constant 0 : i32
    %c0_i32_1 = arith.constant 0 : i32
    return %arg0, %c0_i32, %c0_i32_0 : i32, i32, i32
  }
}

</mosaic_0001>

<llo_original>
// kernel: tpu_custom_call.1
$region0: #{tpu_custom_call.1}
  #allocation0 [shape = 'u32[]', space=smem, size = 0x4, offset = 0x4, fixed_abs, tag = 'smem constant byte address 0x4 - core index']
  #allocation1 [shape = 'u32[72,128]{1,0:T(1,128)}', space=vmem, size = 0x9000, scoped, tag = 'internal scratch']
  #allocation2 [shape = 'f32[1,64,128]{2,1,0:T(8,128)}', space=vmem, size = 0x8000, scoped, tag = 'scratch operand']
  %s0 = inlined_call_operand.hbm [shape: f32[2,64,256], index: 0, kind: input, shape index: {}]
  %s1 = inlined_call_operand.vmem [shape: f32[64,16], index: 1, kind: input, shape index: {}]
  %s2 = inlined_call_operand.vmem [shape: f32[16,64], index: 2, kind: input, shape index: {}]
  %s3 = inlined_call_operand.hbm [shape: f32[2,1,64], index: 3, kind: output, shape index: {}]
  %s4 = sld [smem:[#allocation0]]
  $region57: #{tpu_custom_call.1} parent=0
    _
  %s6 = ssub.s32 1, %s4
  %s7 = scalar_select 0, %s6, %s4
  $region1: #{tpu_custom_call.1} parent=0
    #allocation3 [shape = 'u8[131072]{0}', space=vmem, size = 0x20000, scoped, tag = 'input window, operand 0']
    #allocation4 [shape = 's32[2]{0}', space=sflag, size = 0x8, scoped, tag = 'scoped memory for tpu_custom_call.1']
    #allocation5 [shape = 's32[2]{0}', space=sflag, size = 0x8, scoped, tag = 'scoped memory for tpu_custom_call.1']
    #allocation6 [shape = 'u8[1024]{0}', space=vmem, size = 0x400, scoped, tag = 'output window, operand 0']
    %8 = vsyncpa [#allocation4], 0
    %s9 = scalar_lea.sflag [#allocation4], 1
    %10 = vsyncpa %s9, 0
    %11 = vsyncpa [#allocation5], 0
    %s12 = scalar_lea.sflag [#allocation5], 1
    %13 = vsyncpa %s12, 0
    loop: start=0, step=1, limit=4
    $region2: #{tpu_custom_call.1} parent=1 // loop_pre_header
      _
    $region3: #{tpu_custom_call.1} parent=1 // loop_header
      %s15 = sphi 0, %s19
      %p16 = scmp.ge.s32.totalorder %s15, 4
      %s22 = sphi 0, %s34
      %s23 = sphi 0, %s30
      %s24 = sphi 0, %s22
      %s25 = sphi 0, %s23
      %s26 = sphi 0, %s24
      %s27 = sphi 0, %s25
      %s39 = sphi 0, %s41
      %s42 = sphi 0, %s39
      %s43 = sphi 0, %s42
      %s59 = sphi 0, %s43
      %s63 = sphi 0, %s63
      %s65 = sphi 0, %s63
      %s66 = sphi 0, %s65
      %s80 = sphi 0, %s66
      %s84 = sphi 0, %s84
      %s86 = sphi 0, %s84
      %s87 = sphi 0, %s86
      %s101 = sphi 0, %s87
      %s107 = sphi 0, %s109
      %s110 = sphi 0, %s107
      %s111 = sphi 0, %s110
      %s127 = sphi 0, %s111
    $region4: #{tpu_custom_call.1} parent=1 // loop_header_branch
      %18 = sbr.rel (%p16) target = $region8
    $region5: #{tpu_custom_call.1} parent=1 // loop_body
      %s20 = ssub.s32 %s15, 1
      %s21 = ssub.s32 %s15, 2
      %s28 = sadd.s32 1, %s23
      %p29 = scmp.ge.s32.totalorder %s28, 1
      %s30 = scalar_select %p29, 0, %s28
      %s31 = sadd.s32 1, %s22
      %s32 = scalar_select %p29, %s31, %s22
      %p33 = scmp.ge.s32.totalorder %s32, 2
      %s34 = scalar_select %p33, 0, %s32
      %s35 = ssub.s32 %s22, %s34
      %s36 = ssub.s32 %s23, %s30
      %s37 = sor.u32 %s35, %s36
      %p38 = scmp.eq.s32.totalorder %s37, 0
      %s40 = sadd.s32 %s39, 1
      %s41 = scalar_select %p38, %s39, %s40
      %p44 = pneg %p38
      %p45 = scmp.eq.s32.totalorder %s15, 1
      %p46 = por %p44, %p45
      %p47 = scmp.ne.s32.totalorder %s39, %s42
      %p48 = scmp.eq.s32.totalorder %s15, 0
      %p49 = por %p47, %p48
      %p50 = scmp.ne.s32.totalorder %s39, %s42
      %p51 = scmp.eq.s32.totalorder %s20, 1
      %p52 = por %p50, %p51
      %p53 = scmp.ne.s32.totalorder %s42, %s43
      %p54 = scmp.eq.s32.totalorder %s20, 0
      %p55 = por %p53, %p54
      %p56 = scmp.ne.s32.totalorder %s42, %s43
      %p57 = scmp.eq.s32.totalorder %s21, 1
      %p58 = por %p56, %p57
      %p60 = scmp.ne.s32.totalorder %s43, %s59
      %p61 = scmp.eq.s32.totalorder %s21, 0
      %p62 = por %p60, %p61
      %s64 = sadd.s32 %s63, 1
      %p67 = scmp.eq.s32.totalorder %s15, 1
      %p68 = scmp.ne.s32.totalorder %s63, %s65
      %p69 = scmp.eq.s32.totalorder %s15, 0
      %p70 = por %p68, %p69
      %p71 = scmp.ne.s32.totalorder %s63, %s65
      %p72 = scmp.eq.s32.totalorder %s20, 1
      %p73 = por %p71, %p72
      %p74 = scmp.ne.s32.totalorder %s65, %s66
      %p75 = scmp.eq.s32.totalorder %s20, 0
      %p76 = por %p74, %p75
      %p77 = scmp.ne.s32.totalorder %s65, %s66
      %p78 = scmp.eq.s32.totalorder %s21, 1
      %p79 = por %p77, %p78
      %p81 = scmp.ne.s32.totalorder %s66, %s80
      %p82 = scmp.eq.s32.totalorder %s21, 0
      %p83 = por %p81, %p82
      %s85 = sadd.s32 %s84, 1
      %p88 = scmp.eq.s32.totalorder %s15, 1
      %p89 = scmp.ne.s32.totalorder %s84, %s86
      %p90 = scmp.eq.s32.totalorder %s15, 0
      %p91 = por %p89, %p90
      %p92 = scmp.ne.s32.totalorder %s84, %s86
      %p93 = scmp.eq.s32.totalorder %s20, 1
      %p94 = por %p92, %p93
      %p95 = scmp.ne.s32.totalorder %s86, %s87
      %p96 = scmp.eq.s32.totalorder %s20, 0
      %p97 = por %p95, %p96
      %p98 = scmp.ne.s32.totalorder %s86, %s87
      %p99 = scmp.eq.s32.totalorder %s21, 1
      %p100 = por %p98, %p99
      %p102 = scmp.ne.s32.totalorder %s87, %s101
      %p103 = scmp.eq.s32.totalorder %s21, 0
      %p104 = por %p102, %p103
      %s105 = ssub.s32 %s22, %s34
      %p106 = scmp.eq.s32.totalorder %s105, 0
      %s108 = sadd.s32 %s107, 1
      %s109 = scalar_select %p106, %s107, %s108
      %p112 = pneg %p106
      %p113 = scmp.eq.s32.totalorder %s15, 1
      %p114 = por %p112, %p113
      %p115 = scmp.ne.s32.totalorder %s107, %s110
      %p116 = scmp.eq.s32.totalorder %s15, 0
      %p117 = por %p115, %p116
      %p118 = scmp.ne.s32.totalorder %s107, %s110
      %p119 = scmp.eq.s32.totalorder %s20, 1
      %p120 = por %p118, %p119
      %p121 = scmp.ne.s32.totalorder %s110, %s111
      %p122 = scmp.eq.s32.totalorder %s20, 0
      %p123 = por %p121, %p122
      %p124 = scmp.ne.s32.totalorder %s110, %s111
      %p125 = scmp.eq.s32.totalorder %s21, 1
      %p126 = por %p124, %p125
      %p128 = scmp.ne.s32.totalorder %s111, %s127
      %p129 = scmp.eq.s32.totalorder %s21, 0
      %p130 = por %p128, %p129
      %p131 = scmp.le.s32.totalorder 1, %s15
      %p132 = scmp.lt.s32.totalorder %s15, 3
      %p133 = pnand %p131, %p132
      %p134 = pneg %p133
      // Predicated region
      $region9: #{tpu_custom_call.1} parent=5 // pred_check
        _
      $region10: #{tpu_custom_call.1} parent=5 // pred_check_branch
        %136 = sbr.rel (%p133) target = $region12
      $region11: #{tpu_custom_call.1} parent=5 // pred_region
        %s137 = ssub.s32 %s15, 1
        // Predicated region
        $region13: #{tpu_custom_call.1} parent=11 // pred_check
          %p138 = pneg %p76
        $region14: #{tpu_custom_call.1} parent=11 // pred_check_branch
          %140 = sbr.rel (%p138) target = $region16
        $region15: #{tpu_custom_call.1} parent=11 // pred_region
          _
        $region16: #{tpu_custom_call.1} parent=11 // pred_fallthru
          _
        // Predicated region
        $region17: #{tpu_custom_call.1} parent=11 // pred_check
          %p141 = pneg %p97
        $region18: #{tpu_custom_call.1} parent=11 // pred_check_branch
          %143 = sbr.rel (%p141) target = $region20
        $region19: #{tpu_custom_call.1} parent=11 // pred_region
          _
        $region20: #{tpu_custom_call.1} parent=11 // pred_fallthru
          _
      $region12: #{tpu_custom_call.1} parent=5 // pred_fallthru
        _
      %p144 = scmp.lt.s32.totalorder %s15, 2
      // Predicated region
      $region21: #{tpu_custom_call.1} parent=5 // pred_check
        %p145 = pneg %p144
      $region22: #{tpu_custom_call.1} parent=5 // pred_check_branch
        %147 = sbr.rel (%p145) target = $region24
      $region23: #{tpu_custom_call.1} parent=5 // pred_region
        // Predicated region
        $region25: #{tpu_custom_call.1} parent=23 // pred_check
          %p148 = pneg %p49
        $region26: #{tpu_custom_call.1} parent=23 // pred_check_branch
          %150 = sbr.rel (%p148) target = $region28
        $region27: #{tpu_custom_call.1} parent=23 // pred_region
          %s151 = sand.u32 %s39, 1
          %s152 = scalar_lea.sflag [#allocation4], %s151
          %s153 = sand.u32 %s39, 1
          %s154 = smul.addr %s153, 128
          %s155 = scalar_lea.vmem [#allocation3], %s154
          %s156 = smul.u32 2, %s23
          %158 = vsyncadd %s152, 0
          %s159 = smul.addr %s22, 16
          %s160 = sadd.s32 %s156, %s159
          %s161 = smul.addr %s160, 8
          %s162 = scalar_lea.hbm %s0, %s161
          %s163 = sshll.u32 %s162, 4
          %s164 = int_to_ptr.hbm [resolvable:$true] %s163
          %s165 = sshll.u32 %s155, 4
          %s166 = int_to_ptr.vmem [resolvable:$true] %s165
          %171 = dma.hbm_to_vmem [thread:$0]  %s164, 2048, %s166, %s152, 256, 256, 16
        $region28: #{tpu_custom_call.1} parent=23 // pred_fallthru
          _
      $region24: #{tpu_custom_call.1} parent=5 // pred_fallthru
        _
      %p172 = scmp.le.s32.totalorder 1, %s15
      %p173 = scmp.lt.s32.totalorder %s15, 3
      %p174 = pnand %p172, %p173
      %p175 = pneg %p174
      // Predicated region
      $region29: #{tpu_custom_call.1} parent=5 // pred_check
        _
      $region30: #{tpu_custom_call.1} parent=5 // pred_check_branch
        %177 = sbr.rel (%p174) target = $region32
      $region31: #{tpu_custom_call.1} parent=5 // pred_region
        %s178 = ssub.s32 %s15, 1
        %s179 = sand.u32 %s42, 1
        %s180 = scalar_lea.sflag [#allocation4], %s179
        %s181 = sand.u32 %s42, 1
        %s182 = smul.addr %s181, 128
        %s183 = scalar_lea.vmem [#allocation3], %s182
        // Predicated region
        $region33: #{tpu_custom_call.1} parent=31 // pred_check
          %p184 = pneg %p55
        $region34: #{tpu_custom_call.1} parent=31 // pred_check_branch
          %186 = sbr.rel (%p184) target = $region36
        $region35: #{tpu_custom_call.1} parent=31 // pred_region
          %188 = dma.done %s180, 2048
        $region36: #{tpu_custom_call.1} parent=31 // pred_fallthru
          _
        %s189 = sand.u32 %s42, 1
        %s190 = scalar_lea.sflag [#allocation4], %s189
        %s191 = sand.u32 %s42, 1
        %s192 = smul.addr %s191, 128
        %s193 = scalar_lea.vmem [#allocation3], %s192
        %p194 = pneg %p55
        %p195 = pneg %p52
        %p196 = pneg %p76
        %p197 = pneg %p73
        %p198 = pneg %p97
        %p199 = pneg %p94
        %p200 = pneg %p123
        %p201 = pneg %p120
        %s202 = sand.u32 %s110, 1
        %s203 = scalar_lea.sflag [#allocation5], %s202
        %s204 = sand.u32 %s110, 1
        %s205 = scalar_lea.vmem [#allocation6], %s204
        %s206 = smul.u32 2, %s25
        %p207 = scmp.eq.s32.totalorder %s25, 0
        // Predicated region
        $region37: #{tpu_custom_call.1} parent=31 // pred_check
          %p208 = pneg %p207
        $region38: #{tpu_custom_call.1} parent=31 // pred_check_branch
          %210 = sbr.rel (%p208) target = $region40
        $region39: #{tpu_custom_call.1} parent=31 // pred_region
          %211 = vst [vmem:[#allocation2] sm:$0xff] -inf
          %212 = vst [vmem:[#allocation2 + $0x8] sm:$0xff] -inf
          %213 = vst [vmem:[#allocation2 + $0x10] sm:$0xff] -inf
          %214 = vst [vmem:[#allocation2 + $0x18] sm:$0xff] -inf
          %215 = vst [vmem:[#allocation2 + $0x20] sm:$0xff] -inf
          %216 = vst [vmem:[#allocation2 + $0x28] sm:$0xff] -inf
          %217 = vst [vmem:[#allocation2 + $0x30] sm:$0xff] -inf
          %218 = vst [vmem:[#allocation2 + $0x38] sm:$0xff] -inf
        $region40: #{tpu_custom_call.1} parent=31 // pred_fallthru
          _
        %v219 = vld [vmem:[%s183] sm:$0xff]
        %v220 = vld [vmem:[%s183 + $0x8] sm:$0xff]
        %v221 = vld [vmem:[%s183 + $0x10] sm:$0xff]
        %v222 = vld [vmem:[%s183 + $0x18] sm:$0xff]
        %v223 = vld [vmem:[%s183 + $0x20] sm:$0xff]
        %v224 = vld [vmem:[%s183 + $0x28] sm:$0xff]
        %v225 = vld [vmem:[%s183 + $0x30] sm:$0xff]
        %v226 = vld [vmem:[%s183 + $0x38] sm:$0xff]
        %v227 = vld [vmem:[%s183 + $0x40] sm:$0xff]
        %v228 = vld [vmem:[%s183 + $0x48] sm:$0xff]
        %v229 = vld [vmem:[%s183 + $0x50] sm:$0xff]
        %v230 = vld [vmem:[%s183 + $0x58] sm:$0xff]
        %v231 = vld [vmem:[%s183 + $0x60] sm:$0xff]
        %v232 = vld [vmem:[%s183 + $0x68] sm:$0xff]
        %v233 = vld [vmem:[%s183 + $0x70] sm:$0xff]
        %v234 = vld [vmem:[%s183 + $0x78] sm:$0xff]
        %v235 = vmax.f32 %v219, %v220
        %v236 = vmax.f32 %v221, %v222
        %v237 = vmax.f32 %v223, %v224
        %v238 = vmax.f32 %v225, %v226
        %v239 = vmax.f32 %v227, %v228
        %v240 = vmax.f32 %v229, %v230
        %v241 = vmax.f32 %v231, %v232
        %v242 = vmax.f32 %v233, %v234
        %v243 = vld [vmem:[#allocation2] sm:$0xff]
        %v244 = vld [vmem:[#allocation2 + $0x8] sm:$0xff]
        %v245 = vld [vmem:[#allocation2 + $0x10] sm:$0xff]
        %v246 = vld [vmem:[#allocation2 + $0x18] sm:$0xff]
        %v247 = vld [vmem:[#allocation2 + $0x20] sm:$0xff]
        %v248 = vld [vmem:[#allocation2 + $0x28] sm:$0xff]
        %v249 = vld [vmem:[#allocation2 + $0x30] sm:$0xff]
        %v250 = vld [vmem:[#allocation2 + $0x38] sm:$0xff]
        %v251 = vmax.f32 %v243, %v235
        %v252 = vmax.f32 %v244, %v236
        %v253 = vmax.f32 %v245, %v237
        %v254 = vmax.f32 %v246, %v238
        %v255 = vmax.f32 %v247, %v239
        %v256 = vmax.f32 %v248, %v240
        %v257 = vmax.f32 %v249, %v241
        %v258 = vmax.f32 %v250, %v242
        %259 = vst [vmem:[#allocation2] sm:$0xff] %v251
        %260 = vst [vmem:[#allocation2 + $0x8] sm:$0xff] %v252
        %261 = vst [vmem:[#allocation2 + $0x10] sm:$0xff] %v253
        %262 = vst [vmem:[#allocation2 + $0x18] sm:$0xff] %v254
        %263 = vst [vmem:[#allocation2 + $0x20] sm:$0xff] %v255
        %264 = vst [vmem:[#allocation2 + $0x28] sm:$0xff] %v256
        %265 = vst [vmem:[#allocation2 + $0x30] sm:$0xff] %v257
        %266 = vst [vmem:[#allocation2 + $0x38] sm:$0xff] %v258
        // Predicated region
        $region41: #{tpu_custom_call.1} parent=31 // pred_check
          %p267 = pneg %p207
        $region42: #{tpu_custom_call.1} parent=31 // pred_check_branch
          %269 = sbr.rel (%p267) target = $region44
        $region43: #{tpu_custom_call.1} parent=31 // pred_region
          %v270 = vld [vmem:[#allocation2] sm:$0xff]
          %v271 = vld [vmem:[#allocation2 + $0x8] sm:$0xff]
          %v272 = vld [vmem:[#allocation2 + $0x10] sm:$0xff]
          %v273 = vld [vmem:[#allocation2 + $0x18] sm:$0xff]
          %v274 = vld [vmem:[#allocation2 + $0x20] sm:$0xff]
          %v275 = vld [vmem:[#allocation2 + $0x28] sm:$0xff]
          %v276 = vld [vmem:[#allocation2 + $0x30] sm:$0xff]
          %v277 = vld [vmem:[#allocation2 + $0x38] sm:$0xff]
          %278 = vmax.xlane.f32.xlu0 %v270
          %v279 = vpop.xlane.xlu0 %278
          %280 = vmax.xlane.f32.xlu0 %v271
          %v281 = vpop.xlane.xlu0 %280
          %282 = vmax.xlane.f32.xlu0 %v272
          %v283 = vpop.xlane.xlu0 %282
          %284 = vmax.xlane.f32.xlu0 %v273
          %v285 = vpop.xlane.xlu0 %284
          %286 = vmax.xlane.f32.xlu0 %v274
          %v287 = vpop.xlane.xlu0 %286
          %288 = vmax.xlane.f32.xlu0 %v275
          %v289 = vpop.xlane.xlu0 %288
          %290 = vmax.xlane.f32.xlu0 %v276
          %v291 = vpop.xlane.xlu0 %290
          %292 = vmax.xlane.f32.xlu0 %v277
          %v293 = vpop.xlane.xlu0 %292
          %v294 = vld [vmem:[%s1] sm:$0xff]
          %v295 = vld [vmem:[%s1 + $0x8] sm:$0xff]
          %v296 = vld [vmem:[%s1 + $0x10] sm:$0xff]
          %v297 = vld [vmem:[%s1 + $0x18] sm:$0xff]
          %v298 = vld [vmem:[%s1 + $0x20] sm:$0xff]
          %v299 = vld [vmem:[%s1 + $0x28] sm:$0xff]
          %v300 = vld [vmem:[%s1 + $0x30] sm:$0xff]
          %v301 = vld [vmem:[%s1 + $0x38] sm:$0xff]
          %v310 = vlaneseq
          %v311 = vand.u32 %v310, 127
          %v312 = vperm.slane %v279, %v311
          %v313 = vadd.s32 %v311, 4294967288
          %v314 = vperm.slane %v281, %v313
          %vm315 = vcmask 130112
          %v316 = vsel %vm315, %v314, %v312
          %v317 = vadd.s32 %v311, 4294967280
          %v318 = vperm.slane %v283, %v317
          %vm319 = vcmask 195712
          %v320 = vsel %vm319, %v318, %v316
          %v321 = vadd.s32 %v311, 4294967272
          %v322 = vperm.slane %v285, %v321
          %vm323 = vcmask 261312
          %v324 = vsel %vm323, %v322, %v320
          %v325 = vadd.s32 %v311, 4294967264
          %v326 = vperm.slane %v287, %v325
          %vm327 = vcmask 326912
          %v328 = vsel %vm327, %v326, %v324
          %v329 = vadd.s32 %v311, 4294967256
          %v330 = vperm.slane %v289, %v329
          %vm331 = vcmask 392512
          %v332 = vsel %vm331, %v330, %v328
          %v333 = vadd.s32 %v311, 4294967248
          %v334 = vperm.slane %v291, %v333
          %vm335 = vcmask 458112
          %v336 = vsel %vm335, %v334, %v332
          %v337 = vadd.s32 %v311, 4294967240
          %v338 = vperm.slane %v293, %v337
          %vm339 = vcmask 523712
          %v340 = vsel %vm339, %v338, %v336
          %vm341 = vcmask 523264
          %v342 = vsel %vm341, %v340, 0
          %344 = vmatpush.msra.mxu0 0.0
          %345 = vmatpush.msra.mxu0 0.0
          %346 = vmatpush.msra.mxu0 0.0
          %347 = vmatpush.msra.mxu0 0.0
          %348 = vmatpush.msra.mxu0 0.0
          %349 = vmatpush.msra.mxu0 0.0
          %350 = vmatpush.msra.mxu0 0.0
          %351 = vmatpush.msra.mxu0 0.0
          %352 = vmatpush.msra.mxu0 %v301
          %353 = vmatpush.msra.mxu0 %v300
          %354 = vmatpush.msra.mxu0 %v299
          %355 = vmatpush.msra.mxu0 %v298
          %356 = vmatpush.msra.mxu0 %v297
          %357 = vmatpush.msra.mxu0 %v296
          %358 = vmatpush.msra.mxu0 %v295
          %359 = vmatpush.msra.mxu0 %v294
          %360 = vmatmul.f32.gmra.mxu0 %v342
          %v361 = vpop.f32.mrf.mxu0
          %v362 = vadd.f32 0.0, %v361
          %363 = vdwg.mxu0
          %v364 = vmax.f32 %v362, 0.0
          %v365 = vld [vmem:[%s2] sm:$0xff]
          %v366 = vld [vmem:[%s2 + $0x8] sm:$0xff]
          %vm367 = vcmask 130048
          %v369 = vsel %vm367, %v364, 0
          %371 = vmatpush.msra.mxu0 0.0
          %372 = vmatpush.msra.mxu0 0.0
          %373 = vmatpush.msra.mxu0 0.0
          %374 = vmatpush.msra.mxu0 0.0
          %375 = vmatpush.msra.mxu0 0.0
          %376 = vmatpush.msra.mxu0 0.0
          %377 = vmatpush.msra.mxu0 0.0
          %378 = vmatpush.msra.mxu0 0.0
          %379 = vmatpush.msra.mxu0 0.0
          %380 = vmatpush.msra.mxu0 0.0
          %381 = vmatpush.msra.mxu0 0.0
          %382 = vmatpush.msra.mxu0 0.0
          %383 = vmatpush.msra.mxu0 0.0
          %384 = vmatpush.msra.mxu0 0.0
          %385 = vmatpush.msra.mxu0 %v366
          %386 = vmatpush.msra.mxu0 %v365
          %387 = vmatmul.f32.gmra.mxu0 %v369
          %v388 = vpop.f32.mrf.mxu0
          %v389 = vadd.f32 0.0, %v388
          %390 = vdwg.mxu0
          %v391 = vxor.u32 %v389, 2147483648
          %v392 = vmul.f32 %v391, 1.442695
          %v393 = vpow.pop %v392
          %v394 = vadd.f32 %v393, 1.0
          %v395 = vrcp.pop %v394
          %v396 = vmul.f32 %v394, %v395
          %v397 = vsub.f32 1.0, %v396
          %v398 = vmul.f32 %v395, %v397
          %v399 = vadd.f32 %v395, %v398
          %vm400 = vweird.f32 %v394
          %vm401 = vweird.f32 %v395
          %vm402 = vmor %vm400, %vm401
          %v403 = vsel %vm402, %v395, %v399
          %v404 = vand.u32 2147483647, %v394
          %vm405 = vcmp.eq.f32.partialorder %v404, 8.507059e+37
          %v406 = vand.u32 %v394, 2147483648
          %v407 = vor.u32 1.1754944e-38, %v406
          %v408 = vsel %vm405, %v407, %v403
          %v409 = vmul.f32 1.0, %v408
          %vm410 = vcmask 516096
          %411 = vst.msk [vmem:[%s205] sm:$0x1] %vm410, %v409
        $region44: #{tpu_custom_call.1} parent=31 // pred_fallthru
          _
        %s412 = sand.u32 %s110, 1
        %s413 = scalar_lea.sflag [#allocation5], %s412
        %s414 = sand.u32 %s110, 1
        %s415 = scalar_lea.vmem [#allocation6], %s414
        // Predicated region
        $region45: #{tpu_custom_call.1} parent=31 // pred_check
          %p416 = pneg %p120
        $region46: #{tpu_custom_call.1} parent=31 // pred_check_branch
          %418 = sbr.rel (%p416) target = $region48
        $region47: #{tpu_custom_call.1} parent=31 // pred_region
          %420 = vsyncadd %s413, 0
          %s421 = scalar_lea.hbm %s3, %s24
          %s423 = sshll.u32 %s415, 4
          %s424 = int_to_ptr.vmem [resolvable:$true] %s423
          %s425 = sshll.u32 %s421, 4
          %s426 = int_to_ptr.hbm [resolvable:$true] %s425
          %428 = dma.vmem_to_hbm [thread:$0]  %s424, 16, %s426, %s413
        $region48: #{tpu_custom_call.1} parent=31 // pred_fallthru
          _
      $region32: #{tpu_custom_call.1} parent=5 // pred_fallthru
        _
      %p429 = scmp.le.s32.totalorder 2, %s15
      // Predicated region
      $region49: #{tpu_custom_call.1} parent=5 // pred_check
        %p430 = pneg %p429
      $region50: #{tpu_custom_call.1} parent=5 // pred_check_branch
        %432 = sbr.rel (%p430) target = $region52
      $region51: #{tpu_custom_call.1} parent=5 // pred_region
        %s433 = ssub.s32 %s15, 2
        // Predicated region
        $region53: #{tpu_custom_call.1} parent=51 // pred_check
          %p434 = pneg %p126
        $region54: #{tpu_custom_call.1} parent=51 // pred_check_branch
          %436 = sbr.rel (%p434) target = $region56
        $region55: #{tpu_custom_call.1} parent=51 // pred_region
          %s437 = sand.u32 %s111, 1
          %s438 = scalar_lea.sflag [#allocation5], %s437
          %s439 = sand.u32 %s111, 1
          %s440 = scalar_lea.vmem [#allocation6], %s439
          %442 = dma.done %s438, 16
        $region56: #{tpu_custom_call.1} parent=51 // pred_fallthru
          _
      $region52: #{tpu_custom_call.1} parent=5 // pred_fallthru
        _
    $region6: #{tpu_custom_call.1} parent=1 // loop_footer
      %s19 = sadd.s32 1, %s15
    $region7: #{tpu_custom_call.1} parent=1 // loop_footer_branch
      %14 = sbr.rel target = $region3
    $region8: #{tpu_custom_call.1} parent=1 // loop_exit
      _
    %443 = vsyncpa [#allocation4], 1
    %s444 = scalar_lea.sflag [#allocation4], 1
    %445 = vsyncpa %s444, 1
    %446 = vsyncpa [#allocation5], 1
    %s447 = scalar_lea.sflag [#allocation5], 1
    %448 = vsyncpa %s447, 1

</llo_original>
